<compile_context>
chip_gen: v7x
topology: tpu7x:2x2x1
jax: 0.10.0
libtpu: 0.0.40
codegen_flags: <defaults>
</compile_context>

<pallas_src>
import functools

import jax
import jax.numpy as jnp
from jax.experimental import pallas as pl
from jax.experimental.pallas import tpu as pltpu

BN_EPS = 1e-5


# --------------------------------------------------------------------------- #
# Kernel
# --------------------------------------------------------------------------- #
def predictor_kernel(x_ref, w1_ref, wslab_ref, wout_ref, bslab_ref, bout_ref,
                     out_ref):
    """Fused MLP: 4 matmuls (MXU), bias+ReLU (VPU), narrow lane-dense f32 store.

    x_ref:     (TB, input_dim)  f32   (cast to bf16 in-kernel)
    w1_ref:    (input_dim, 64)  bf16  (BN1 folded in)
    wslab_ref: (2, 64, 64)      bf16  [W2 | fused-head layer-1], zero-padded
    wout_ref:  (64, 8)          bf16  block-diag head-2: col 0 rot, cols 1:3 pos
    bslab_ref: (3, 64)          f32   [b1 | b2 | bh1], zero-padded
    bout_ref:  (1, 8)           f32   head-2 bias (cols 0:3 meaningful)
    out_ref:   (TB, 8)          f32   col 0 = rotation, cols 1:3 = position
    """
    bias = bslab_ref[...]                               # (3, 64) f32, loaded once

    x = x_ref[...].astype(jnp.bfloat16)                 # in-kernel cast (VPU slack)
    h = jnp.dot(x, w1_ref[...], preferred_element_type=jnp.float32)
    h = jnp.maximum(h + bias[0:1, :], 0.0)

    for i in range(2):  # shared layer 2, fused head layer 1 (both with ReLU)
        h = jnp.dot(h.astype(jnp.bfloat16), wslab_ref[i],
                    preferred_element_type=jnp.float32)
        h = jnp.maximum(h + bias[i + 1:i + 2, :], 0.0)

    # Fused head layer 2 (no ReLU) -> narrow 8-wide output.
    out = jnp.dot(h.astype(jnp.bfloat16), wout_ref[...],
                  preferred_element_type=jnp.float32)
    out_ref[...] = out + bout_ref[...]


# --------------------------------------------------------------------------- #
# Parameter construction / packing
# --------------------------------------------------------------------------- #
def init_params(key, input_dim):
    """PyTorch-style raw parameters (Linear W:(out,in), b:(out,), BN per-channel)."""
    it = iter(jax.random.split(key, 28))

    def lin(d_in, d_out):
        kw, kb = next(it), next(it)
        bound = 1.0 / (d_in ** 0.5)
        w = jax.random.uniform(kw, (d_out, d_in), jnp.float32, -bound, bound)
        b = jax.random.uniform(kb, (d_out,), jnp.float32, -bound, bound)
        return w, b

    def bn(c):
        kg, kb, km, kv = next(it), next(it), next(it), next(it)
        g = jax.random.uniform(kg, (c,), jnp.float32, 0.8, 1.2)
        be = 0.1 * jax.random.normal(kb, (c,), jnp.float32)
        m = 0.1 * jax.random.normal(km, (c,), jnp.float32)
        v = jax.random.uniform(kv, (c,), jnp.float32, 0.5, 1.5)
        return g, be, m, v

    p = {}
    p["l1"] = lin(input_dim, 64); p["bn1"] = bn(64)
    p["l2"] = lin(64, 32);        p["bn2"] = bn(32)
    p["l3"] = lin(32, 16);        p["bn3"] = bn(16)
    p["l4"] = lin(16, 1)
    p["l5"] = lin(32, 16);        p["bn5"] = bn(16)
    p["l6"] = lin(16, 2)
    return p


def _fold(lin, bn):
    """Fold eval-mode BatchNorm into the preceding Linear. Returns (in,out) W, (out,) b."""
    w, b = lin
    g, be, m, v = bn
    scale = g * jax.lax.rsqrt(v + BN_EPS)           # (out,)
    wf = (w * scale[:, None]).T                     # (in, out)
    bf = (b - m) * scale + be                       # (out,)
    return wf, bf


def pack_params(p):
    """BN-fold, head-fuse, pad mid-layers to (64,64), keep head-2 narrow (64,8)."""
    w1, b1 = _fold(p["l1"], p["bn1"])               # (in,64), (64,)
    w2, b2 = _fold(p["l2"], p["bn2"])               # (64,32), (32,)
    w3, b3 = _fold(p["l3"], p["bn3"])               # (32,16)
    w5, b5 = _fold(p["l5"], p["bn5"])               # (32,16)
    w4, b4 = p["l4"]                                # (1,16), (1,)
    w6, b6 = p["l6"]                                # (2,16), (2,)

    # Fused head layer 1: cols 0:16 rotation branch, 16:32 position branch.
    wh1 = jnp.concatenate([w3, w5], axis=1)         # (32,32)
    bh1 = jnp.concatenate([b3, b5])                 # (32,)

    # Narrow block-diagonal head layer 2: (64,8); col 0 = rotation, cols 1:3 = position.
    wout = jnp.zeros((64, 8), jnp.float32)
    wout = wout.at[0:16, 0:1].set(w4.T)
    wout = wout.at[16:32, 1:3].set(w6.T)
    bout = jnp.zeros((1, 8), jnp.float32).at[0, 0:3].set(jnp.concatenate([b4, b6]))

    def pad_w(w):
        return jnp.zeros((64, 64), jnp.float32).at[: w.shape[0], : w.shape[1]].set(w)

    def pad_b(b):
        return jnp.zeros((64,), jnp.float32).at[: b.shape[0]].set(b)

    wslab = jnp.stack([pad_w(w2), pad_w(wh1)]).astype(jnp.bfloat16)   # (2,64,64)
    bslab = jnp.stack([pad_b(b1), pad_b(b2), pad_b(bh1)])             # (3,64) f32
    return (w1.astype(jnp.bfloat16), wslab, wout.astype(jnp.bfloat16),
            bslab, bout)


# --------------------------------------------------------------------------- #
# Wrapper
# --------------------------------------------------------------------------- #
def _round_up(n, m):
    return ((n + m - 1) // m) * m


@functools.partial(jax.jit, static_argnames=("tb",))
def _predictor_call(x, w1, wslab, wout, bslab, bout, *, tb):
    B, input_dim = x.shape
    grid = (pl.cdiv(B, tb),)                         # ragged last block is masked
    return pl.pallas_call(
        predictor_kernel,
        out_shape=jax.ShapeDtypeStruct((B, 8), jnp.float32),
        grid_spec=pltpu.PrefetchScalarGridSpec(
            num_scalar_prefetch=0,
            grid=grid,
            in_specs=[
                pl.BlockSpec((tb, input_dim), lambda i: (i, 0)),   # x: batch-tiled
                pl.BlockSpec((input_dim, 64), lambda i: (0, 0)),   # w1: VMEM-resident
                pl.BlockSpec((2, 64, 64), lambda i: (0, 0, 0)),    # weight slab
                pl.BlockSpec((64, 8), lambda i: (0, 0)),           # narrow head-2 W
                pl.BlockSpec((3, 64), lambda i: (0, 0)),           # bias slab
                pl.BlockSpec((1, 8), lambda i: (0, 0)),            # head-2 bias
            ],
            out_specs=pl.BlockSpec((tb, 8), lambda i: (i, 0)),
        ),
        compiler_params=pltpu.CompilerParams(
            dimension_semantics=("parallel",),       # v7x: shard batch over 2 TCs
        ),
    )(x, w1, wslab, wout, bslab, bout)


def predictor_forward(x, packed, tb=None):
    """Returns (rotation (B,1), position (B,2)) in float32."""
    B = x.shape[0]
    if tb is None:
        # Large tiles to amortize the ~0.35us per-grid-step overhead, while keeping
        # ~16 grid steps (v7x 2-core sharding + pipeline overlap).  Cap at 8192 rows:
        # double-buffered x(f32)+out(f32) tiles ~= 2*(4*in_dim+32)*tb bytes (~2.6 MB
        # at in_dim=32), comfortably under v5e's 16 MiB scoped-VMEM default.
        tb = min(8192, max(8, _round_up(-(-B // 16), 8)))
    tb = max(8, _round_up(tb, 8))
    out = _predictor_call(x, *packed, tb=tb)
    return out[:, 0:1], out[:, 1:3]


# --------------------------------------------------------------------------- #
# References
# --------------------------------------------------------------------------- #
def reference_forward(x, p):
    """Original module semantics (eval-mode BN, dropout=identity), full f32."""
    def lin(h, lp):
        w, b = lp
        return h @ w.T + b

    def bn(h, bp):
        g, be, m, v = bp
        return (h - m) * (g / jnp.sqrt(v + BN_EPS)) + be

    h = jax.nn.relu(bn(lin(x, p["l1"]), p["bn1"]))
    h = jax.nn.relu(bn(lin(h, p["l2"]), p["bn2"]))
    r = jax.nn.relu(bn(lin(h, p["l3"]), p["bn3"]))
    rot = lin(r, p["l4"])
    q = jax.nn.relu(bn(lin(h, p["l5"]), p["bn5"]))
    pos = lin(q, p["l6"])
    return rot, pos


def reference_packed(x, packed):
    """Pure-JAX mirror of the exact kernel math (bf16 operands, f32 accumulate)."""
    w1, wslab, wout, bslab, bout = packed
    h = jnp.dot(x.astype(jnp.bfloat16), w1, preferred_element_type=jnp.float32)
    h = jnp.maximum(h + bslab[0:1], 0.0)
    for i in range(2):
        h = jnp.dot(h.astype(jnp.bfloat16), wslab[i],
                    preferred_element_type=jnp.float32)
        h = jnp.maximum(h + bslab[i + 1:i + 2], 0.0)
    out = jnp.dot(h.astype(jnp.bfloat16), wout,
                  preferred_element_type=jnp.float32) + bout
    return out[:, 0:1], out[:, 1:3]


# --------------------------------------------------------------------------- #
# Main
# --------------------------------------------------------------------------- #
if __name__ == "__main__":
    INPUT_DIM = 32
    BATCH = 27  # non-multiple of the tile: exercises the ragged masked last block

    key = jax.random.PRNGKey(0)
    kx, kp = jax.random.split(key)
    x = jax.random.normal(kx, (BATCH, INPUT_DIM), jnp.float32)
    raw_params = init_params(kp, INPUT_DIM)
    packed = pack_params(raw_params)

    rot, pos = predictor_forward(x, packed, tb=8)   # 4-step grid, last block ragged
    jax.block_until_ready((rot, pos))

    assert rot.shape == (BATCH, 1) and pos.shape == (BATCH, 2)

    # Tight check against a reference that mirrors the kernel math exactly.
    rot_p, pos_p = reference_packed(x, packed)
    assert jnp.allclose(rot, rot_p, atol=1e-3, rtol=1e-3)
    assert jnp.allclose(pos, pos_p, atol=1e-3, rtol=1e-3)

    # Semantic check against the original (unfolded, f32) module; bf16 tolerance.
    rot_f, pos_f = reference_forward(x, raw_params)
    assert jnp.allclose(rot, rot_f, atol=5e-2, rtol=5e-2)
    assert jnp.allclose(pos, pos_f, atol=5e-2, rtol=5e-2)

    # Also exercise the default large-batch tile heuristic once.
    rot_d, pos_d = predictor_forward(x, packed)
    jax.block_until_ready((rot_d, pos_d))
    assert jnp.allclose(rot_d, rot_p, atol=1e-3, rtol=1e-3)
    assert jnp.allclose(pos_d, pos_p, atol=1e-3, rtol=1e-3)

    print("KERNEL_OK")
</pallas_src>

<mosaic_0001>
module attributes {stable_mosaic.version = 11 : i64} {
  func.func @predictor_kernel(%arg0: i32, %arg1: memref<8x32xf32, #tpu.memory_space<vmem>>, %arg2: memref<32x64xbf16, #tpu.memory_space<vmem>>, %arg3: memref<2x64x64xbf16, #tpu.memory_space<vmem>>, %arg4: memref<64x8xbf16, #tpu.memory_space<vmem>>, %arg5: memref<3x64xf32, #tpu.memory_space<vmem>>, %arg6: memref<1x8xf32, #tpu.memory_space<vmem>>, %arg7: memref<8x8xf32, #tpu.memory_space<vmem>>) attributes {dimension_semantics = [#tpu.dimension_semantics<parallel>], iteration_bounds = array<i64: 4>, scalar_prefetch = 0 : i64, scratch_operands = 0 : i64, tpu.core_type = #tpu.core_type<tc>, window_params = [{transform_indices = @transform_0, window_bounds = array<i64: 8, 32>}, {pipeline_mode = #tpu.pipeline_mode<synchronous>, transform_indices = @transform_1, window_bounds = array<i64: 32, 64>}, {pipeline_mode = #tpu.pipeline_mode<synchronous>, transform_indices = @transform_2, window_bounds = array<i64: 2, 64, 64>}, {pipeline_mode = #tpu.pipeline_mode<synchronous>, transform_indices = @transform_3, window_bounds = array<i64: 64, 8>}, {pipeline_mode = #tpu.pipeline_mode<synchronous>, transform_indices = @transform_4, window_bounds = array<i64: 3, 64>}, {pipeline_mode = #tpu.pipeline_mode<synchronous>, transform_indices = @transform_5, window_bounds = array<i64: 1, 8>}, {transform_indices = @transform_6, window_bounds = array<i64: 8, 8>}]} {
    %c0 = arith.constant 0 : index
    %c0_0 = arith.constant 0 : index
    %0 = vector.load %arg5[%c0, %c0_0] : memref<3x64xf32, #tpu.memory_space<vmem>>, vector<3x64xf32>
    %c0_1 = arith.constant 0 : index
    %c0_2 = arith.constant 0 : index
    %1 = vector.load %arg1[%c0_1, %c0_2] : memref<8x32xf32, #tpu.memory_space<vmem>>, vector<8x32xf32>
    %2 = arith.truncf %1 : vector<8x32xf32> to vector<8x32xbf16>
    %c0_3 = arith.constant 0 : index
    %c0_4 = arith.constant 0 : index
    %3 = vector.load %arg2[%c0_3, %c0_4] : memref<32x64xbf16, #tpu.memory_space<vmem>>, vector<32x64xbf16>
    %cst = arith.constant dense<0.000000e+00> : vector<8x64xf32>
    %4 = tpu.matmul %2, %3, %cst {dimension_numbers = #tpu.dot_dimension_numbers<[1], [0], [0], [1], [0, 0, 1, 1], [], []>} : vector<8x32xbf16>, vector<32x64xbf16>, vector<8x64xf32> -> vector<8x64xf32>
    %5 = vector.extract_strided_slice %0 {offsets = [0, 0], sizes = [1, 64], strides = [1, 1]} : vector<3x64xf32> to vector<1x64xf32>
    %6 = vector.broadcast %5 : vector<1x64xf32> to vector<8x64xf32>
    %7 = arith.addf %4, %6 : vector<8x64xf32>
    %cst_5 = arith.constant 0.000000e+00 : f32
    %8 = vector.broadcast %cst_5 : f32 to vector<8x64xf32>
    %9 = arith.maximumf %7, %8 : vector<8x64xf32>
    %10 = arith.truncf %9 : vector<8x64xf32> to vector<8x64xbf16>
    %c0_6 = arith.constant 0 : index
    %c0_7 = arith.constant 0 : index
    %c0_8 = arith.constant 0 : index
    %11 = vector.load %arg3[%c0_6, %c0_7, %c0_8] : memref<2x64x64xbf16, #tpu.memory_space<vmem>>, vector<1x64x64xbf16>
    %12 = vector.shape_cast %11 : vector<1x64x64xbf16> to vector<64x64xbf16>
    %cst_9 = arith.constant dense<0.000000e+00> : vector<8x64xf32>
    %13 = tpu.matmul %10, %12, %cst_9 {dimension_numbers = #tpu.dot_dimension_numbers<[1], [0], [0], [1], [0, 0, 1, 1], [], []>} : vector<8x64xbf16>, vector<64x64xbf16>, vector<8x64xf32> -> vector<8x64xf32>
    %14 = vector.extract_strided_slice %0 {offsets = [1, 0], sizes = [1, 64], strides = [1, 1]} : vector<3x64xf32> to vector<1x64xf32>
    %15 = vector.broadcast %14 : vector<1x64xf32> to vector<8x64xf32>
    %16 = arith.addf %13, %15 : vector<8x64xf32>
    %cst_10 = arith.constant 0.000000e+00 : f32
    %17 = vector.broadcast %cst_10 : f32 to vector<8x64xf32>
    %18 = arith.maximumf %16, %17 : vector<8x64xf32>
    %19 = arith.truncf %18 : vector<8x64xf32> to vector<8x64xbf16>
    %c1 = arith.constant 1 : index
    %c0_11 = arith.constant 0 : index
    %c0_12 = arith.constant 0 : index
    %20 = vector.load %arg3[%c1, %c0_11, %c0_12] : memref<2x64x64xbf16, #tpu.memory_space<vmem>>, vector<1x64x64xbf16>
    %21 = vector.shape_cast %20 : vector<1x64x64xbf16> to vector<64x64xbf16>
    %cst_13 = arith.constant dense<0.000000e+00> : vector<8x64xf32>
    %22 = tpu.matmul %19, %21, %cst_13 {dimension_numbers = #tpu.dot_dimension_numbers<[1], [0], [0], [1], [0, 0, 1, 1], [], []>} : vector<8x64xbf16>, vector<64x64xbf16>, vector<8x64xf32> -> vector<8x64xf32>
    %23 = vector.extract_strided_slice %0 {offsets = [2, 0], sizes = [1, 64], strides = [1, 1]} : vector<3x64xf32> to vector<1x64xf32>
    %24 = vector.broadcast %23 : vector<1x64xf32> to vector<8x64xf32>
    %25 = arith.addf %22, %24 : vector<8x64xf32>
    %cst_14 = arith.constant 0.000000e+00 : f32
    %26 = vector.broadcast %cst_14 : f32 to vector<8x64xf32>
    %27 = arith.maximumf %25, %26 : vector<8x64xf32>
    %28 = arith.truncf %27 : vector<8x64xf32> to vector<8x64xbf16>
    %c0_15 = arith.constant 0 : index
    %c0_16 = arith.constant 0 : index
    %29 = vector.load %arg4[%c0_15, %c0_16] : memref<64x8xbf16, #tpu.memory_space<vmem>>, vector<64x8xbf16>
    %cst_17 = arith.constant dense<0.000000e+00> : vector<8x8xf32>
    %30 = tpu.matmul %28, %29, %cst_17 {dimension_numbers = #tpu.dot_dimension_numbers<[1], [0], [0], [1], [0, 0, 1, 1], [], []>} : vector<8x64xbf16>, vector<64x8xbf16>, vector<8x8xf32> -> vector<8x8xf32>
    %c0_18 = arith.constant 0 : index
    %c0_19 = arith.constant 0 : index
    %31 = vector.load %arg6[%c0_18, %c0_19] : memref<1x8xf32, #tpu.memory_space<vmem>>, vector<1x8xf32>
    %32 = vector.broadcast %31 : vector<1x8xf32> to vector<8x8xf32>
    %33 = arith.addf %30, %32 : vector<8x8xf32>
    %c0_20 = arith.constant 0 : index
    %c0_21 = arith.constant 0 : index
    %34 = vector.load %arg7[%c0_20, %c0_21] : memref<8x8xf32, #tpu.memory_space<vmem>>, vector<8x8xf32>
    tpu.vector_store %arg7[%c0_20, %c0_21], %33 {strides = array<i32>} : memref<8x8xf32, #tpu.memory_space<vmem>>, vector<8x8xf32>,
    return
  }
  func.func @transform_0(%arg0: i32) -> (i32, i32) {
    %c0_i32 = arith.constant 0 : i32
    %c0_i32_0 = arith.constant 0 : i32
    return %arg0, %c0_i32 : i32, i32
  }
  func.func @transform_1(%arg0: i32) -> (i32, i32) {
    %c0_i32 = arith.constant 0 : i32
    %c0_i32_0 = arith.constant 0 : i32
    %c0_i32_1 = arith.constant 0 : i32
    return %c0_i32, %c0_i32_0 : i32, i32
  }
  func.func @transform_2(%arg0: i32) -> (i32, i32, i32) {
    %c0_i32 = arith.constant 0 : i32
    %c0_i32_0 = arith.constant 0 : i32
    %c0_i32_1 = arith.constant 0 : i32
    %c0_i32_2 = arith.constant 0 : i32
    return %c0_i32, %c0_i32_0, %c0_i32_1 : i32, i32, i32
  }
  func.func @transform_3(%arg0: i32) -> (i32, i32) {
    %c0_i32 = arith.constant 0 : i32
    %c0_i32_0 = arith.constant 0 : i32
    %c0_i32_1 = arith.constant 0 : i32
    return %c0_i32, %c0_i32_0 : i32, i32
  }
  func.func @transform_4(%arg0: i32) -> (i32, i32) {
    %c0_i32 = arith.constant 0 : i32
    %c0_i32_0 = arith.constant 0 : i32
    %c0_i32_1 = arith.constant 0 : i32
    return %c0_i32, %c0_i32_0 : i32, i32
  }
  func.func @transform_5(%arg0: i32) -> (i32, i32) {
    %c0_i32 = arith.constant 0 : i32
    %c0_i32_0 = arith.constant 0 : i32
    %c0_i32_1 = arith.constant 0 : i32
    return %c0_i32, %c0_i32_0 : i32, i32
  }
  func.func @transform_6(%arg0: i32) -> (i32, i32) {
    %c0_i32 = arith.constant 0 : i32
    %c0_i32_0 = arith.constant 0 : i32
    return %arg0, %c0_i32 : i32, i32
  }
}

</mosaic_0001>

<llo_original>
// kernel: _predictor_call.1
$region0: #{_predictor_call.1}
  #allocation0 [shape = 'u32[]', space=smem, size = 0x4, offset = 0x4, fixed_abs, tag = 'smem constant byte address 0x4 - core index']
  #allocation1 [shape = 'u32[144,128]{1,0:T(1,128)}', space=vmem, size = 0x12000, scoped, tag = 'internal scratch']
  %s0 = inlined_call_operand.vmem [shape: f32[27,32], index: 0, kind: input, shape index: {}]
  %s1 = inlined_call_operand.hbm [shape: bf16[32,64], index: 1, kind: input, shape index: {}]
  %s2 = inlined_call_operand.hbm [shape: bf16[2,64,64], index: 2, kind: input, shape index: {}]
  %s3 = inlined_call_operand.vmem [shape: bf16[64,8], index: 3, kind: input, shape index: {}]
  %s4 = inlined_call_operand.vmem [shape: f32[3,64], index: 4, kind: input, shape index: {}]
  %s5 = inlined_call_operand.vmem [shape: f32[1,8], index: 5, kind: input, shape index: {}]
  %s6 = inlined_call_operand.vmem [shape: f32[27,8], index: 6, kind: output, shape index: {}]
  %s7 = sld [smem:[#allocation0]]
  $region65: #{_predictor_call.1} parent=0
    _
  %s9 = ssub.s32 1, %s7
  %s10 = scalar_select 0, %s9, %s7
  $region1: #{_predictor_call.1} parent=0
    #allocation2 [shape = 'u8[8192]{0}', space=vmem, size = 0x2000, scoped, tag = 'input window, operand 1, single buffered']
    #allocation3 [shape = 's32[2]{0}', space=sflag, size = 0x8, scoped, tag = 'scoped memory for _predictor_call.1']
    #allocation4 [shape = 'u8[32768]{0}', space=vmem, size = 0x8000, scoped, tag = 'input window, operand 2, single buffered']
    #allocation5 [shape = 's32[1]{0}', space=sflag, size = 0x4, scoped, tag = 'scoped memory for _predictor_call.1']
    %11 = vsyncpa [#allocation3], 0
    %12 = vsyncpa [#allocation5], 0
    loop: start=0, step=1, limit=6
    $region2: #{_predictor_call.1} parent=1 // loop_pre_header
      _
    $region3: #{_predictor_call.1} parent=1 // loop_header
      %s14 = sphi 0, %s18
      %p15 = scmp.ge.s32.totalorder %s14, 6
      %s24 = sphi 0, %s26
      %s27 = sphi 0, %s24
      %s28 = sphi 0, %s27
      %s44 = sphi 0, %s28
      %s48 = sphi 0, %s48
      %s50 = sphi 0, %s48
      %s51 = sphi 0, %s50
      %s65 = sphi 0, %s51
      %s69 = sphi 0, %s69
      %s71 = sphi 0, %s69
      %s72 = sphi 0, %s71
      %s86 = sphi 0, %s72
      %s90 = sphi 0, %s90
      %s92 = sphi 0, %s90
      %s93 = sphi 0, %s92
      %s107 = sphi 0, %s93
      %s111 = sphi 0, %s111
      %s113 = sphi 0, %s111
      %s114 = sphi 0, %s113
      %s128 = sphi 0, %s114
      %s132 = sphi 0, %s132
      %s134 = sphi 0, %s132
      %s135 = sphi 0, %s134
      %s149 = sphi 0, %s135
      %s155 = sphi 0, %s157
      %s158 = sphi 0, %s155
      %s159 = sphi 0, %s158
      %s175 = sphi 0, %s159
    $region4: #{_predictor_call.1} parent=1 // loop_header_branch
      %17 = sbr.rel (%p15) target = $region8
    $region5: #{_predictor_call.1} parent=1 // loop_body
      %s19 = ssub.s32 %s14, 1
      %s20 = ssub.s32 %s14, 2
      %s21 = sadd.s32 %s14, 1
      %s22 = ssub.s32 %s14, %s21
      %p23 = scmp.eq.s32.totalorder %s22, 0
      %s25 = sadd.s32 %s24, 1
      %s26 = scalar_select %p23, %s24, %s25
      %p29 = pneg %p23
      %p30 = scmp.eq.s32.totalorder %s14, 3
      %p31 = por %p29, %p30
      %p32 = scmp.ne.s32.totalorder %s24, %s27
      %p33 = scmp.eq.s32.totalorder %s14, 0
      %p34 = por %p32, %p33
      %p35 = scmp.ne.s32.totalorder %s24, %s27
      %p36 = scmp.eq.s32.totalorder %s19, 3
      %p37 = por %p35, %p36
      %p38 = scmp.ne.s32.totalorder %s27, %s28
      %p39 = scmp.eq.s32.totalorder %s19, 0
      %p40 = por %p38, %p39
      %p41 = scmp.ne.s32.totalorder %s27, %s28
      %p42 = scmp.eq.s32.totalorder %s20, 3
      %p43 = por %p41, %p42
      %p45 = scmp.ne.s32.totalorder %s28, %s44
      %p46 = scmp.eq.s32.totalorder %s20, 0
      %p47 = por %p45, %p46
      %s49 = sadd.s32 %s48, 1
      %p52 = scmp.eq.s32.totalorder %s14, 3
      %p53 = scmp.ne.s32.totalorder %s48, %s50
      %p54 = scmp.eq.s32.totalorder %s14, 0
      %p55 = por %p53, %p54
      %p56 = scmp.ne.s32.totalorder %s48, %s50
      %p57 = scmp.eq.s32.totalorder %s19, 3
      %p58 = por %p56, %p57
      %p59 = scmp.ne.s32.totalorder %s50, %s51
      %p60 = scmp.eq.s32.totalorder %s19, 0
      %p61 = por %p59, %p60
      %p62 = scmp.ne.s32.totalorder %s50, %s51
      %p63 = scmp.eq.s32.totalorder %s20, 3
      %p64 = por %p62, %p63
      %p66 = scmp.ne.s32.totalorder %s51, %s65
      %p67 = scmp.eq.s32.totalorder %s20, 0
      %p68 = por %p66, %p67
      %s70 = sadd.s32 %s69, 1
      %p73 = scmp.eq.s32.totalorder %s14, 3
      %p74 = scmp.ne.s32.totalorder %s69, %s71
      %p75 = scmp.eq.s32.totalorder %s14, 0
      %p76 = por %p74, %p75
      %p77 = scmp.ne.s32.totalorder %s69, %s71
      %p78 = scmp.eq.s32.totalorder %s19, 3
      %p79 = por %p77, %p78
      %p80 = scmp.ne.s32.totalorder %s71, %s72
      %p81 = scmp.eq.s32.totalorder %s19, 0
      %p82 = por %p80, %p81
      %p83 = scmp.ne.s32.totalorder %s71, %s72
      %p84 = scmp.eq.s32.totalorder %s20, 3
      %p85 = por %p83, %p84
      %p87 = scmp.ne.s32.totalorder %s72, %s86
      %p88 = scmp.eq.s32.totalorder %s20, 0
      %p89 = por %p87, %p88
      %s91 = sadd.s32 %s90, 1
      %p94 = scmp.eq.s32.totalorder %s14, 3
      %p95 = scmp.ne.s32.totalorder %s90, %s92
      %p96 = scmp.eq.s32.totalorder %s14, 0
      %p97 = por %p95, %p96
      %p98 = scmp.ne.s32.totalorder %s90, %s92
      %p99 = scmp.eq.s32.totalorder %s19, 3
      %p100 = por %p98, %p99
      %p101 = scmp.ne.s32.totalorder %s92, %s93
      %p102 = scmp.eq.s32.totalorder %s19, 0
      %p103 = por %p101, %p102
      %p104 = scmp.ne.s32.totalorder %s92, %s93
      %p105 = scmp.eq.s32.totalorder %s20, 3
      %p106 = por %p104, %p105
      %p108 = scmp.ne.s32.totalorder %s93, %s107
      %p109 = scmp.eq.s32.totalorder %s20, 0
      %p110 = por %p108, %p109
      %s112 = sadd.s32 %s111, 1
      %p115 = scmp.eq.s32.totalorder %s14, 3
      %p116 = scmp.ne.s32.totalorder %s111, %s113
      %p117 = scmp.eq.s32.totalorder %s14, 0
      %p118 = por %p116, %p117
      %p119 = scmp.ne.s32.totalorder %s111, %s113
      %p120 = scmp.eq.s32.totalorder %s19, 3
      %p121 = por %p119, %p120
      %p122 = scmp.ne.s32.totalorder %s113, %s114
      %p123 = scmp.eq.s32.totalorder %s19, 0
      %p124 = por %p122, %p123
      %p125 = scmp.ne.s32.totalorder %s113, %s114
      %p126 = scmp.eq.s32.totalorder %s20, 3
      %p127 = por %p125, %p126
      %p129 = scmp.ne.s32.totalorder %s114, %s128
      %p130 = scmp.eq.s32.totalorder %s20, 0
      %p131 = por %p129, %p130
      %s133 = sadd.s32 %s132, 1
      %p136 = scmp.eq.s32.totalorder %s14, 3
      %p137 = scmp.ne.s32.totalorder %s132, %s134
      %p138 = scmp.eq.s32.totalorder %s14, 0
      %p139 = por %p137, %p138
      %p140 = scmp.ne.s32.totalorder %s132, %s134
      %p141 = scmp.eq.s32.totalorder %s19, 3
      %p142 = por %p140, %p141
      %p143 = scmp.ne.s32.totalorder %s134, %s135
      %p144 = scmp.eq.s32.totalorder %s19, 0
      %p145 = por %p143, %p144
      %p146 = scmp.ne.s32.totalorder %s134, %s135
      %p147 = scmp.eq.s32.totalorder %s20, 3
      %p148 = por %p146, %p147
      %p150 = scmp.ne.s32.totalorder %s135, %s149
      %p151 = scmp.eq.s32.totalorder %s20, 0
      %p152 = por %p150, %p151
      %s153 = ssub.s32 %s14, %s21
      %p154 = scmp.eq.s32.totalorder %s153, 0
      %s156 = sadd.s32 %s155, 1
      %s157 = scalar_select %p154, %s155, %s156
      %p160 = pneg %p154
      %p161 = scmp.eq.s32.totalorder %s14, 3
      %p162 = por %p160, %p161
      %p163 = scmp.ne.s32.totalorder %s155, %s158
      %p164 = scmp.eq.s32.totalorder %s14, 0
      %p165 = por %p163, %p164
      %p166 = scmp.ne.s32.totalorder %s155, %s158
      %p167 = scmp.eq.s32.totalorder %s19, 3
      %p168 = por %p166, %p167
      %p169 = scmp.ne.s32.totalorder %s158, %s159
      %p170 = scmp.eq.s32.totalorder %s19, 0
      %p171 = por %p169, %p170
      %p172 = scmp.ne.s32.totalorder %s158, %s159
      %p173 = scmp.eq.s32.totalorder %s20, 3
      %p174 = por %p172, %p173
      %p176 = scmp.ne.s32.totalorder %s159, %s175
      %p177 = scmp.eq.s32.totalorder %s20, 0
      %p178 = por %p176, %p177
      %p179 = scmp.le.s32.totalorder 1, %s14
      %p180 = scmp.lt.s32.totalorder %s14, 5
      %p181 = pnand %p179, %p180
      %p182 = pneg %p181
      // Predicated region
      $region9: #{_predictor_call.1} parent=5 // pred_check
        _
      $region10: #{_predictor_call.1} parent=5 // pred_check_branch
        %184 = sbr.rel (%p181) target = $region12
      $region11: #{_predictor_call.1} parent=5 // pred_region
        %s185 = ssub.s32 %s14, 1
        // Predicated region
        $region13: #{_predictor_call.1} parent=11 // pred_check
          %p186 = pneg %p61
        $region14: #{_predictor_call.1} parent=11 // pred_check_branch
          %188 = sbr.rel (%p186) target = $region16
        $region15: #{_predictor_call.1} parent=11 // pred_region
          %s190 = ssub.s32 256, 256
          %191 = vsyncadd [#allocation3], %s190
          %s192 = sshll.u32 [#allocation2], 4
          %s193 = int_to_ptr.vmem [resolvable:$true] %s192
          %198 = dma.hbm_to_vmem [thread:$0]  %s1, 256, %s193, [#allocation3], 64, 64, 4
        $region16: #{_predictor_call.1} parent=11 // pred_fallthru
          _
        // Predicated region
        $region17: #{_predictor_call.1} parent=11 // pred_check
          %p199 = pneg %p82
        $region18: #{_predictor_call.1} parent=11 // pred_check_branch
          %201 = sbr.rel (%p199) target = $region20
        $region19: #{_predictor_call.1} parent=11 // pred_region
          %s203 = ssub.s32 1024, 1024
          %204 = vsyncadd [#allocation5], %s203
          %s205 = sshll.u32 [#allocation4], 4
          %s206 = int_to_ptr.vmem [resolvable:$true] %s205
          %211 = dma.hbm_to_vmem [thread:$0]  %s2, 1024, %s206, [#allocation5], 64, 64, 4
        $region20: #{_predictor_call.1} parent=11 // pred_fallthru
          _
        // Predicated region
        $region21: #{_predictor_call.1} parent=11 // pred_check
          %p212 = pneg %p103
        $region22: #{_predictor_call.1} parent=11 // pred_check_branch
          %214 = sbr.rel (%p212) target = $region24
        $region23: #{_predictor_call.1} parent=11 // pred_region
          _
        $region24: #{_predictor_call.1} parent=11 // pred_fallthru
          _
        // Predicated region
        $region25: #{_predictor_call.1} parent=11 // pred_check
          %p215 = pneg %p124
        $region26: #{_predictor_call.1} parent=11 // pred_check_branch
          %217 = sbr.rel (%p215) target = $region28
        $region27: #{_predictor_call.1} parent=11 // pred_region
          _
        $region28: #{_predictor_call.1} parent=11 // pred_fallthru
          _
        // Predicated region
        $region29: #{_predictor_call.1} parent=11 // pred_check
          %p218 = pneg %p145
        $region30: #{_predictor_call.1} parent=11 // pred_check_branch
          %220 = sbr.rel (%p218) target = $region32
        $region31: #{_predictor_call.1} parent=11 // pred_region
          _
        $region32: #{_predictor_call.1} parent=11 // pred_fallthru
          _
      $region12: #{_predictor_call.1} parent=5 // pred_fallthru
        _
      %p221 = scmp.lt.s32.totalorder %s14, 4
      // Predicated region
      $region33: #{_predictor_call.1} parent=5 // pred_check
        %p222 = pneg %p221
      $region34: #{_predictor_call.1} parent=5 // pred_check_branch
        %224 = sbr.rel (%p222) target = $region36
      $region35: #{_predictor_call.1} parent=5 // pred_region
        // Predicated region
        $region37: #{_predictor_call.1} parent=35 // pred_check
          %p225 = pneg %p34
        $region38: #{_predictor_call.1} parent=35 // pred_check_branch
          %227 = sbr.rel (%p225) target = $region40
        $region39: #{_predictor_call.1} parent=35 // pred_region
          %p228 = scmp.lt.s32.totalorder %s14, 3
          %s229 = scalar_select %p228, %s14, 3
          %s230 = smul.addr %s229, 8
          %s231 = scalar_lea.vmem %s0, %s230
        $region40: #{_predictor_call.1} parent=35 // pred_fallthru
          _
      $region36: #{_predictor_call.1} parent=5 // pred_fallthru
        _
      %p232 = scmp.le.s32.totalorder 1, %s14
      %p233 = scmp.lt.s32.totalorder %s14, 5
      %p234 = pnand %p232, %p233
      %p235 = pneg %p234
      // Predicated region
      $region41: #{_predictor_call.1} parent=5 // pred_check
        _
      $region42: #{_predictor_call.1} parent=5 // pred_check_branch
        %237 = sbr.rel (%p234) target = $region44
      $region43: #{_predictor_call.1} parent=5 // pred_region
        %s238 = ssub.s32 %s14, 1
        // Predicated region
        $region45: #{_predictor_call.1} parent=43 // pred_check
          %p239 = pneg %p61
        $region46: #{_predictor_call.1} parent=43 // pred_check_branch
          %241 = sbr.rel (%p239) target = $region48
        $region47: #{_predictor_call.1} parent=43 // pred_region
          %242 = dma.done [#allocation3], 256
        $region48: #{_predictor_call.1} parent=43 // pred_fallthru
          _
        // Predicated region
        $region49: #{_predictor_call.1} parent=43 // pred_check
          %p243 = pneg %p82
        $region50: #{_predictor_call.1} parent=43 // pred_check_branch
          %245 = sbr.rel (%p243) target = $region52
        $region51: #{_predictor_call.1} parent=43 // pred_region
          %246 = dma.done [#allocation5], 1024
        $region52: #{_predictor_call.1} parent=43 // pred_fallthru
          _
        %p247 = scmp.lt.s32.totalorder %s19, 3
        %s248 = scalar_select %p247, %s19, 3
        %s249 = smul.addr %s248, 8
        %s250 = scalar_lea.vmem %s0, %s249
        %p251 = pneg %p40
        %p252 = pneg %p37
        %p253 = pneg %p61
        %p254 = pneg %p58
        %p255 = pneg %p82
        %p256 = pneg %p79
        %p257 = pneg %p103
        %p258 = pneg %p100
        %p259 = pneg %p124
        %p260 = pneg %p121
        %p261 = pneg %p145
        %p262 = pneg %p142
        %p263 = pneg %p171
        %p264 = pneg %p168
        %p265 = scmp.lt.s32.totalorder %s19, 3
        %s266 = scalar_select %p265, %s19, 3
        %s267 = smul.addr %s266, 8
        %s268 = scalar_lea.vmem %s6, %s267
        %p269 = scmp.lt.s32.totalorder %s19, 3
        %s270 = scalar_select %p269, %s19, 3
        %s271 = smul.addr %s270, 8
        %s272 = scalar_lea.vmem %s0, %s271
        %p273 = scmp.lt.s32.totalorder %s19, 3
        %s274 = scalar_select %p273, %s19, 3
        %s275 = smul.addr %s274, 8
        %s276 = scalar_lea.vmem %s6, %s275
        %v278 = vld [vmem:[%s4] sm:$0x7]
        %v279 = vld [vmem:[%s272] sm:$0xff]
        %v280 = vpack.c.bf16 %v279, %v279
        %v281 = vld [vmem:[#allocation2] sm:$0xf]
        %v282 = vld [vmem:[#allocation2 + $0x4] sm:$0xf]
        %v283 = vld [vmem:[#allocation2 + $0x8] sm:$0xf]
        %v284 = vld [vmem:[#allocation2 + $0xc] sm:$0xf]
        %v285 = vlaneseq
        %v286 = vshrl.u32 %v285, 7
        %v287 = vsub.s32 0, %v286
        %v288 = vrot.slane %v278, %v287
        %v293 = vunpack.c.l.b16 %v281
        %v294 = vunpack.c.l.b16 %v282
        %v295 = vunpack.c.l.b16 %v283
        %v296 = vunpack.c.l.b16 %v284
        %v297 = vpack.c.b16 %v294, %v293
        %v298 = vpack.c.b16 %v296, %v295
        %vm301 = vcmask 261120
        %v303 = vsel %vm301, %v280, 0
        %305 = vmatprep.subr.bf16.mxu0 0
        %306 = vmatpush1.bf16.msra.mxu0 %v297
        %307 = vmatprep.subr.bf16.mxu0 0
        %308 = vmatpush1.bf16.msra.mxu0 %v298
        %309 = vmatprep.subr.bf16.mxu0 0
        %310 = vmatpush1.bf16.msra.mxu0 0
        %311 = vmatprep.subr.bf16.mxu0 0
        %312 = vmatpush1.bf16.msra.mxu0 0
        %313 = vmatprep.subr.bf16.mxu0 0
        %314 = vmatpush1.bf16.msra.mxu0 0
        %315 = vmatprep.subr.bf16.mxu0 0
        %316 = vmatpush1.bf16.msra.mxu0 0
        %317 = vmatprep.subr.bf16.mxu0 0
        %318 = vmatpush1.bf16.msra.mxu0 0
        %319 = vmatprep.subr.bf16.mxu0 0
        %320 = vmatpush1.bf16.msra.mxu0 0
        %321 = vmatprep.subr.bf16.mxu0 0
        %322 = vmatpush1.bf16.msra.mxu0 0
        %323 = vmatprep.subr.bf16.mxu0 0
        %324 = vmatpush1.bf16.msra.mxu0 0
        %325 = vmatprep.subr.bf16.mxu0 0
        %326 = vmatpush1.bf16.msra.mxu0 0
        %327 = vmatprep.subr.bf16.mxu0 0
        %328 = vmatpush1.bf16.msra.mxu0 0
        %329 = vmatprep.subr.bf16.mxu0 0
        %330 = vmatpush1.bf16.msra.mxu0 0
        %331 = vmatprep.subr.bf16.mxu0 0
        %332 = vmatpush1.bf16.msra.mxu0 0
        %333 = vmatprep.subr.bf16.mxu0 0
        %334 = vmatpush1.bf16.msra.mxu0 0
        %335 = vmatprep.subr.bf16.mxu0 0
        %336 = vmatpush1.bf16.msra.mxu0 0
        %337 = vmatprep.mubr.bf16.mxu0 0
        %338 = vmatmul.mubr.bf16.gmra.mrb[0].mxu0 %v303
        %v339 = vpop.f32.mrb[0].mxu0
        %v340 = vadd.f32 %v288, %v339
        %v341 = vpop.f32.mrb[0].mxu0
        %v342 = vpop.f32.mrb[0].mxu0
        %v343 = vpop.f32.mrb[0].mxu0
        %344 = vdwg.mxu0
        %v345 = vmax.f32 %v340, 0.0
        %v346 = vpack.c.bf16 %v345, %v345
        %v347 = vld [vmem:[#allocation4] sm:$0xf]
        %v348 = vld [vmem:[#allocation4 + $0x4] sm:$0xf]
        %v349 = vld [vmem:[#allocation4 + $0x8] sm:$0xf]
        %v350 = vld [vmem:[#allocation4 + $0xc] sm:$0xf]
        %v351 = vld [vmem:[#allocation4 + $0x10] sm:$0xf]
        %v352 = vld [vmem:[#allocation4 + $0x14] sm:$0xf]
        %v353 = vld [vmem:[#allocation4 + $0x18] sm:$0xf]
        %v354 = vld [vmem:[#allocation4 + $0x1c] sm:$0xf]
        %v355 = vlaneseq
        %v356 = vshrl.u32 %v355, 7
        %v357 = vsub.s32 1, %v356
        %v358 = vrot.slane %v278, %v357
        %v367 = vunpack.c.l.b16 %v347
        %v368 = vunpack.c.l.b16 %v348
        %v369 = vunpack.c.l.b16 %v349
        %v370 = vunpack.c.l.b16 %v350
        %v371 = vunpack.c.l.b16 %v351
        %v372 = vunpack.c.l.b16 %v352
        %v373 = vunpack.c.l.b16 %v353
        %v374 = vunpack.c.l.b16 %v354
        %v375 = vpack.c.b16 %v368, %v367
        %v376 = vpack.c.b16 %v370, %v369
        %v377 = vpack.c.b16 %v372, %v371
        %v378 = vpack.c.b16 %v374, %v373
        %vm383 = vcmask 523264
        %v385 = vsel %vm383, %v346, 0
        %387 = vmatprep.subr.bf16.mxu0 0
        %388 = vmatpush1.bf16.msra.mxu0 %v375
        %389 = vmatprep.subr.bf16.mxu0 0
        %390 = vmatpush1.bf16.msra.mxu0 %v376
        %391 = vmatprep.subr.bf16.mxu0 0
        %392 = vmatpush1.bf16.msra.mxu0 %v377
        %393 = vmatprep.subr.bf16.mxu0 0
        %394 = vmatpush1.bf16.msra.mxu0 %v378
        %395 = vmatprep.subr.bf16.mxu0 0
        %396 = vmatpush1.bf16.msra.mxu0 0
        %397 = vmatprep.subr.bf16.mxu0 0
        %398 = vmatpush1.bf16.msra.mxu0 0
        %399 = vmatprep.subr.bf16.mxu0 0
        %400 = vmatpush1.bf16.msra.mxu0 0
        %401 = vmatprep.subr.bf16.mxu0 0
        %402 = vmatpush1.bf16.msra.mxu0 0
        %403 = vmatprep.subr.bf16.mxu0 0
        %404 = vmatpush1.bf16.msra.mxu0 0
        %405 = vmatprep.subr.bf16.mxu0 0
        %406 = vmatpush1.bf16.msra.mxu0 0
        %407 = vmatprep.subr.bf16.mxu0 0
        %408 = vmatpush1.bf16.msra.mxu0 0
        %409 = vmatprep.subr.bf16.mxu0 0
        %410 = vmatpush1.bf16.msra.mxu0 0
        %411 = vmatprep.subr.bf16.mxu0 0
        %412 = vmatpush1.bf16.msra.mxu0 0
        %413 = vmatprep.subr.bf16.mxu0 0
        %414 = vmatpush1.bf16.msra.mxu0 0
        %415 = vmatprep.subr.bf16.mxu0 0
        %416 = vmatpush1.bf16.msra.mxu0 0
        %417 = vmatprep.subr.bf16.mxu0 0
        %418 = vmatpush1.bf16.msra.mxu0 0
        %419 = vmatprep.mubr.bf16.mxu0 0
        %420 = vmatmul.mubr.bf16.gmra.mrb[0].mxu0 %v385
        %v421 = vpop.f32.mrb[0].mxu0
        %v422 = vadd.f32 %v358, %v421
        %v423 = vpop.f32.mrb[0].mxu0
        %v424 = vpop.f32.mrb[0].mxu0
        %v425 = vpop.f32.mrb[0].mxu0
        %426 = vdwg.mxu0
        %v427 = vmax.f32 %v422, 0.0
        %v428 = vpack.c.bf16 %v427, %v427
        %s429 = scalar_lea.vmem [#allocation4], 32
        %v430 = vld [vmem:[%s429] sm:$0xf]
        %v431 = vld [vmem:[%s429 + $0x4] sm:$0xf]
        %v432 = vld [vmem:[%s429 + $0x8] sm:$0xf]
        %v433 = vld [vmem:[%s429 + $0xc] sm:$0xf]
        %v434 = vld [vmem:[%s429 + $0x10] sm:$0xf]
        %v435 = vld [vmem:[%s429 + $0x14] sm:$0xf]
        %v436 = vld [vmem:[%s429 + $0x18] sm:$0xf]
        %v437 = vld [vmem:[%s429 + $0x1c] sm:$0xf]
        %v438 = vlaneseq
        %v439 = vshrl.u32 %v438, 7
        %v440 = vsub.s32 2, %v439
        %v441 = vrot.slane %v278, %v440
        %v450 = vunpack.c.l.b16 %v430
        %v451 = vunpack.c.l.b16 %v431
        %v452 = vunpack.c.l.b16 %v432
        %v453 = vunpack.c.l.b16 %v433
        %v454 = vunpack.c.l.b16 %v434
        %v455 = vunpack.c.l.b16 %v435
        %v456 = vunpack.c.l.b16 %v436
        %v457 = vunpack.c.l.b16 %v437
        %v458 = vpack.c.b16 %v451, %v450
        %v459 = vpack.c.b16 %v453, %v452
        %v460 = vpack.c.b16 %v455, %v454
        %v461 = vpack.c.b16 %v457, %v456
        %v467 = vsel %vm383, %v428, 0
        %469 = vmatprep.subr.bf16.mxu0 0
        %470 = vmatpush1.bf16.msra.mxu0 %v458
        %471 = vmatprep.subr.bf16.mxu0 0
        %472 = vmatpush1.bf16.msra.mxu0 %v459
        %473 = vmatprep.subr.bf16.mxu0 0
        %474 = vmatpush1.bf16.msra.mxu0 %v460
        %475 = vmatprep.subr.bf16.mxu0 0
        %476 = vmatpush1.bf16.msra.mxu0 %v461
        %477 = vmatprep.subr.bf16.mxu0 0
        %478 = vmatpush1.bf16.msra.mxu0 0
        %479 = vmatprep.subr.bf16.mxu0 0
        %480 = vmatpush1.bf16.msra.mxu0 0
        %481 = vmatprep.subr.bf16.mxu0 0
        %482 = vmatpush1.bf16.msra.mxu0 0
        %483 = vmatprep.subr.bf16.mxu0 0
        %484 = vmatpush1.bf16.msra.mxu0 0
        %485 = vmatprep.subr.bf16.mxu0 0
        %486 = vmatpush1.bf16.msra.mxu0 0
        %487 = vmatprep.subr.bf16.mxu0 0
        %488 = vmatpush1.bf16.msra.mxu0 0
        %489 = vmatprep.subr.bf16.mxu0 0
        %490 = vmatpush1.bf16.msra.mxu0 0
        %491 = vmatprep.subr.bf16.mxu0 0
        %492 = vmatpush1.bf16.msra.mxu0 0
        %493 = vmatprep.subr.bf16.mxu0 0
        %494 = vmatpush1.bf16.msra.mxu0 0
        %495 = vmatprep.subr.bf16.mxu0 0
        %496 = vmatpush1.bf16.msra.mxu0 0
        %497 = vmatprep.subr.bf16.mxu0 0
        %498 = vmatpush1.bf16.msra.mxu0 0
        %499 = vmatprep.subr.bf16.mxu0 0
        %500 = vmatpush1.bf16.msra.mxu0 0
        %501 = vmatprep.mubr.bf16.mxu0 0
        %502 = vmatmul.mubr.bf16.gmra.mrb[0].mxu0 %v467
        %v503 = vpop.f32.mrb[0].mxu0
        %v504 = vadd.f32 %v441, %v503
        %v505 = vpop.f32.mrb[0].mxu0
        %v506 = vpop.f32.mrb[0].mxu0
        %v507 = vpop.f32.mrb[0].mxu0
        %508 = vdwg.mxu0
        %v509 = vmax.f32 %v504, 0.0
        %v510 = vpack.c.bf16 %v509, %v509
        %v511 = vld [vmem:[%s3] sm:$0xf]
        %v512 = vld [vmem:[%s3 + $0x4] sm:$0xf]
        %v513 = vld [vmem:[%s3 + $0x8] sm:$0xf]
        %v514 = vld [vmem:[%s3 + $0xc] sm:$0xf]
        %v515 = vld [vmem:[%s3 + $0x10] sm:$0xf]
        %v516 = vld [vmem:[%s3 + $0x14] sm:$0xf]
        %v517 = vld [vmem:[%s3 + $0x18] sm:$0xf]
        %v518 = vld [vmem:[%s3 + $0x1c] sm:$0xf]
        %v519 = vld [vmem:[%s5] sm:$0x1]
        %v521 = vlaneseq
        %v522 = vshrl.u32 %v521, 7
        %v523 = vsub.s32 0, %v522
        %v524 = vrot.slane %v519, %v523
        %v534 = vunpack.c.l.b16 %v511
        %v535 = vunpack.c.l.b16 %v512
        %v536 = vunpack.c.l.b16 %v513
        %v537 = vunpack.c.l.b16 %v514
        %v538 = vunpack.c.l.b16 %v515
        %v539 = vunpack.c.l.b16 %v516
        %v540 = vunpack.c.l.b16 %v517
        %v541 = vunpack.c.l.b16 %v518
        %v542 = vpack.c.b16 %v535, %v534
        %v543 = vpack.c.b16 %v537, %v536
        %v544 = vpack.c.b16 %v539, %v538
        %v545 = vpack.c.b16 %v541, %v540
        %v551 = vsel %vm383, %v510, 0
        %553 = vmatprep.subr.bf16.mxu0 0
        %554 = vmatpush1.bf16.msra.mxu0 %v542
        %555 = vmatprep.subr.bf16.mxu0 0
        %556 = vmatpush1.bf16.msra.mxu0 %v543
        %557 = vmatprep.subr.bf16.mxu0 0
        %558 = vmatpush1.bf16.msra.mxu0 %v544
        %559 = vmatprep.subr.bf16.mxu0 0
        %560 = vmatpush1.bf16.msra.mxu0 %v545
        %561 = vmatprep.subr.bf16.mxu0 0
        %562 = vmatpush1.bf16.msra.mxu0 0
        %563 = vmatprep.subr.bf16.mxu0 0
        %564 = vmatpush1.bf16.msra.mxu0 0
        %565 = vmatprep.subr.bf16.mxu0 0
        %566 = vmatpush1.bf16.msra.mxu0 0
        %567 = vmatprep.subr.bf16.mxu0 0
        %568 = vmatpush1.bf16.msra.mxu0 0
        %569 = vmatprep.subr.bf16.mxu0 0
        %570 = vmatpush1.bf16.msra.mxu0 0
        %571 = vmatprep.subr.bf16.mxu0 0
        %572 = vmatpush1.bf16.msra.mxu0 0
        %573 = vmatprep.subr.bf16.mxu0 0
        %574 = vmatpush1.bf16.msra.mxu0 0
        %575 = vmatprep.subr.bf16.mxu0 0
        %576 = vmatpush1.bf16.msra.mxu0 0
        %577 = vmatprep.subr.bf16.mxu0 0
        %578 = vmatpush1.bf16.msra.mxu0 0
        %579 = vmatprep.subr.bf16.mxu0 0
        %580 = vmatpush1.bf16.msra.mxu0 0
        %581 = vmatprep.subr.bf16.mxu0 0
        %582 = vmatpush1.bf16.msra.mxu0 0
        %583 = vmatprep.subr.bf16.mxu0 0
        %584 = vmatpush1.bf16.msra.mxu0 0
        %585 = vmatprep.mubr.bf16.mxu0 0
        %586 = vmatmul.mubr.bf16.gmra.mrb[0].mxu0 %v551
        %v587 = vpop.f32.mrb[0].mxu0
        %v588 = vadd.f32 %v524, %v587
        %v589 = vpop.f32.mrb[0].mxu0
        %v590 = vpop.f32.mrb[0].mxu0
        %v591 = vpop.f32.mrb[0].mxu0
        %592 = vdwg.mxu0
        %vm593 = vcmask 64512
        %594 = vst.msk [vmem:[%s276] sm:$0xff] %vm593, %v588
        %p595 = scmp.lt.s32.totalorder %s19, 3
        %s596 = scalar_select %p595, %s19, 3
        %s597 = smul.addr %s596, 8
        %s598 = scalar_lea.vmem %s6, %s597
        // Predicated region
        $region53: #{_predictor_call.1} parent=43 // pred_check
          %p599 = pneg %p168
        $region54: #{_predictor_call.1} parent=43 // pred_check_branch
          %601 = sbr.rel (%p599) target = $region56
        $region55: #{_predictor_call.1} parent=43 // pred_region
          _
        $region56: #{_predictor_call.1} parent=43 // pred_fallthru
          _
      $region44: #{_predictor_call.1} parent=5 // pred_fallthru
        _
      %p602 = scmp.le.s32.totalorder 2, %s14
      // Predicated region
      $region57: #{_predictor_call.1} parent=5 // pred_check
        %p603 = pneg %p602
      $region58: #{_predictor_call.1} parent=5 // pred_check_branch
        %605 = sbr.rel (%p603) target = $region60
      $region59: #{_predictor_call.1} parent=5 // pred_region
        %s606 = ssub.s32 %s14, 2
        // Predicated region
        $region61: #{_predictor_call.1} parent=59 // pred_check
          %p607 = pneg %p174
        $region62: #{_predictor_call.1} parent=59 // pred_check_branch
          %609 = sbr.rel (%p607) target = $region64
        $region63: #{_predictor_call.1} parent=59 // pred_region
          %p610 = scmp.lt.s32.totalorder %s20, 3
          %s611 = scalar_select %p610, %s20, 3
          %s612 = smul.addr %s611, 8
          %s613 = scalar_lea.vmem %s6, %s612
        $region64: #{_predictor_call.1} parent=59 // pred_fallthru
          _
      $region60: #{_predictor_call.1} parent=5 // pred_fallthru
        _
    $region6: #{_predictor_call.1} parent=1 // loop_footer
      %s18 = sadd.s32 1, %s14
    $region7: #{_predictor_call.1} parent=1 // loop_footer_branch
      %13 = sbr.rel target = $region3
    $region8: #{_predictor_call.1} parent=1 // loop_exit
      _
    %614 = vsyncpa [#allocation3], 1
    %s615 = scalar_lea.sflag [#allocation3], 1
    %616 = vsyncpa %s615, 1
    %617 = vsyncpa [#allocation5], 1

</llo_original>
